<compile_context>
chip_gen: v7x
topology: tpu7x:2x2x1
jax: 0.10.0
libtpu: 0.0.40
codegen_flags: <defaults>
</compile_context>

<pallas_src>
import functools

import jax
import jax.numpy as jnp
from jax.experimental import pallas as pl
from jax.experimental.pallas import tpu as pltpu


# ----------------------------------------------------------------------------
# Hardware knobs (conservative defaults are safe on every generation).
# ----------------------------------------------------------------------------
@functools.lru_cache(maxsize=1)
def _hw_knobs():
    vmem_limit = 32 * 1024 * 1024   # safe on v5e / v6e / v7x
    n_cores = 1                     # safe default: no core split
    try:
        info = pltpu.get_tpu_info()
        cap = getattr(info, "vmem_capacity_bytes", None)
        if isinstance(cap, int) and cap >= 100 * 1024 * 1024:
            # v5e / v6e have 128 MiB physical VMEM -> allow bigger tiles.
            vmem_limit = 64 * 1024 * 1024
        for attr in ("num_cores", "num_tensorcores", "tensorcore_count",
                     "core_count", "num_cores_per_chip"):
            v = getattr(info, attr, None)
            if isinstance(v, int) and v >= 1:
                n_cores = v
                break
    except Exception:
        pass
    return vmem_limit, n_cores


# ----------------------------------------------------------------------------
# Shared per-sample focal-loss math (class_axis selects the layout).
# ----------------------------------------------------------------------------
def _per_sample_losses(x, tgt, alpha_t, gamma, class_axis):
    """x: f32 logits tile, tgt: i32 (broadcastable), alpha_t: f32 or None.
    Returns per-sample focal loss with keepdims along class_axis."""
    cls = jax.lax.broadcasted_iota(jnp.int32, x.shape, class_axis)
    # x[target] via where+sum (no bool->f32 cast / extra multiply).
    # Note: targets outside [0, C) silently yield x_t = 0 (torch would error).
    x_t = jnp.sum(jnp.where(cls == tgt, x, 0.0), axis=class_axis, keepdims=True)
    m = jnp.max(x, axis=class_axis, keepdims=True)
    s = jnp.sum(jnp.exp(x - m), axis=class_axis, keepdims=True)
    ce = jnp.log(s) + (m - x_t)                 # stable cross-entropy
    pt = jnp.exp(-ce)                           # single EUP op per sample

    one_minus_pt = 1.0 - pt
    g = float(gamma)
    if g == int(g) and g >= 0:
        focal = jnp.ones_like(ce)
        for _ in range(int(g)):                 # gamma=2 -> two cheap VPU muls
            focal = focal * one_minus_pt
    else:
        focal = one_minus_pt ** jnp.float32(g)  # non-integer gamma fallback
    loss = focal * ce
    if alpha_t is not None:
        loss = alpha_t * loss
    return loss


# ----------------------------------------------------------------------------
# Kernels.
# ----------------------------------------------------------------------------
def _focal_mean_kernel(*refs, gamma, n_rows, bn, bpc, use_alpha, samp_axis):
    if use_alpha:
        x_ref, t_ref, a_ref, o_ref, acc_ref = refs
    else:
        x_ref, t_ref, o_ref, acc_ref = refs
        a_ref = None

    ci = pl.program_id(0)           # core-split axis (CORE_PARALLEL on 2-TC chips)
    ii = pl.program_id(1)           # accumulation axis ("arbitrary")

    @pl.when(ii == 0)
    def _():
        acc_ref[...] = jnp.zeros_like(acc_ref)

    x = x_ref[...].astype(jnp.float32)
    alpha_t = a_ref[...].astype(jnp.float32) if use_alpha else None
    loss = _per_sample_losses(x, t_ref[...], alpha_t, gamma, 1 - samp_axis)

    # Sample-validity mask: handles the partial last block and the clamped
    # out-of-range block slots of the core split.
    blk = ci * bpc + ii
    pos = jax.lax.broadcasted_iota(jnp.int32, loss.shape, samp_axis) + blk * bn
    loss = jnp.where(pos < n_rows, loss, 0.0)

    # Vector partial-sum accumulator: per-step cost is a plain VPU add.
    acc_ref[...] += loss

    @pl.when(ii == pl.num_programs(1) - 1)
    def _():
        part = jnp.sum(acc_ref[...]) * jnp.float32(1.0 / n_rows)
        # Lane-dense (8,128) partial tile per core; wrapper sums the partials.
        o_ref[...] = jnp.full(o_ref.shape, part, dtype=jnp.float32)


def _focal_persample_kernel(*refs, gamma, n_rows, bn, use_alpha, samp_axis):
    if use_alpha:
        x_ref, t_ref, a_ref, o_ref = refs
    else:
        x_ref, t_ref, o_ref = refs
        a_ref = None

    ii = pl.program_id(0)
    x = x_ref[...].astype(jnp.float32)
    alpha_t = a_ref[...].astype(jnp.float32) if use_alpha else None
    loss = _per_sample_losses(x, t_ref[...], alpha_t, gamma, 1 - samp_axis)
    pos = jax.lax.broadcasted_iota(jnp.int32, loss.shape, samp_axis) + ii * bn
    o_ref[...] = jnp.where(pos < n_rows, loss, 0.0)


# ----------------------------------------------------------------------------
# Wrapper.
# ----------------------------------------------------------------------------
def focal_loss(logits, target, *, gamma=2, alpha=None, size_average=True):
    """logits: (N, C) float (f32 or bf16), target: (N,) int.
    Matches torch FocalLoss.forward: scalar mean if size_average, else (N,)."""
    n, c = logits.shape
    itemsize = jnp.dtype(logits.dtype).itemsize
    target = target.astype(jnp.int32)

    vmem_limit, n_cores_hw = _hw_knobs()
    # Budget one logits tile at ~vmem_limit/8: covers 2x double-buffered input
    # tiles plus ~3 tile-sized f32 temporaries in the body, with headroom.
    tile_budget = vmem_limit // 8

    use_alpha = alpha is not None
    alpha_t = None
    if use_alpha:
        alpha_arr = jnp.asarray(alpha, dtype=jnp.float32).reshape(-1)
        if alpha_arr.shape[0] == 1 and c > 1:
            # Scalar alpha: binary convention [a, 1-a] when C == 2, otherwise
            # a uniform per-class weight (the torch module expects a length-C list).
            alpha_arr = (jnp.concatenate([alpha_arr, 1.0 - alpha_arr])
                         if c == 2 else jnp.full((c,), alpha_arr[0], jnp.float32))
        if alpha_arr.shape[0] != c:
            raise ValueError(f"alpha must have length C={c}, got {alpha_arr.shape[0]}")
        # Per-sample alpha gather (torch's unique()-based branching is
        # mathematically identical to alpha[target]); done once in the wrapper
        # so the kernel never sees the (1, C) alpha row.
        alpha_t = alpha_arr[target]

    transposed = c < 128
    if transposed:
        # Samples on lanes / classes on sublanes: full vreg utilisation for
        # small C, cheap sublane class-reductions, lane-dense outputs.
        # TODO(synk): if the producer can emit class-major (C, N) logits
        # directly, this wrapper transpose (one extra HBM pass) goes away.
        x_in = logits.T                                  # (C, N)
        tgt_in = target.reshape(1, n)
        a_in = alpha_t.reshape(1, n) if use_alpha else None
        lanes = max(128, (tile_budget // max(1, c * itemsize)) // 128 * 128)
        bn = n if n <= 128 else min(lanes, ((n + 127) // 128) * 128)
        blk_x = (c, bn)
        blk_v = (1, bn)        # target / alpha_t / per-sample out / accumulator
        samp_axis = 1
    else:
        # Classes on lanes (already lane-dense for C >= 128).
        # TODO(synk): for vocab-scale C (rows clamp to 16) add a chunked-C
        # online-logsumexp inner loop (pl.Buffered) to keep big sample tiles.
        x_in = logits
        tgt_in = target.reshape(n, 1)
        a_in = alpha_t.reshape(n, 1) if use_alpha else None
        rows = max(16, (tile_budget // max(1, c * itemsize)) // 16 * 16)
        bn = n if rows >= n else rows                    # multiple of 16 (bf16-safe)
        blk_x = (bn, c)
        blk_v = (bn, 1)
        samp_axis = 0

    n_blocks = pl.cdiv(n, bn)

    def blk_idx(b):
        return (0, b) if transposed else (b, 0)

    cp = dict(vmem_limit_bytes=vmem_limit)

    if size_average:
        n_cores = max(1, min(n_cores_hw, n_blocks))
        bpc = pl.cdiv(n_blocks, n_cores)

        def samp_map(ci, ii):
            # Clamp so out-of-range slots of the core split DMA a valid (but
            # fully masked) tile.
            return blk_idx(jnp.minimum(ci * bpc + ii, n_blocks - 1))

        in_specs = [pl.BlockSpec(blk_x, samp_map), pl.BlockSpec(blk_v, samp_map)]
        args = [x_in, tgt_in]
        if use_alpha:
            in_specs.append(pl.BlockSpec(blk_v, samp_map))
            args.append(a_in)

        kernel = functools.partial(
            _focal_mean_kernel, gamma=gamma, n_rows=n, bn=bn, bpc=bpc,
            use_alpha=use_alpha, samp_axis=samp_axis)

        # Real 2-TensorCore split only where it exists (v7x); 1-TC chips get a
        # size-1 axis with no duplicated work.
        core_sem = (getattr(pltpu, "CORE_PARALLEL", "parallel")
                    if n_cores > 1 else "arbitrary")

        out = pl.pallas_call(
            kernel,
            out_shape=jax.ShapeDtypeStruct((n_cores * 8, 128), jnp.float32),
            grid_spec=pltpu.PrefetchScalarGridSpec(
                num_scalar_prefetch=0,
                grid=(n_cores, bpc),
                in_specs=in_specs,
                out_specs=pl.BlockSpec((8, 128), lambda ci, ii: (ci, 0)),
                scratch_shapes=[pltpu.VMEM(blk_v, jnp.float32)],
            ),
            compiler_params=pltpu.CompilerParams(
                dimension_semantics=(core_sem, "arbitrary"), **cp),
        )(*args)
        # Sum the per-core partial means (each core broadcast its partial over
        # its own (8,128) tile).
        return jnp.sum(out[::8, 0])

    # size_average=False: per-sample losses, fully parallel grid.
    # TODO(synk): on v7x also split this axis across the two TensorCores.
    def samp_map1(ii):
        return blk_idx(ii)

    in_specs = [pl.BlockSpec(blk_x, samp_map1), pl.BlockSpec(blk_v, samp_map1)]
    args = [x_in, tgt_in]
    if use_alpha:
        in_specs.append(pl.BlockSpec(blk_v, samp_map1))
        args.append(a_in)

    kernel = functools.partial(
        _focal_persample_kernel, gamma=gamma, n_rows=n, bn=bn,
        use_alpha=use_alpha, samp_axis=samp_axis)

    out_arr_shape = (1, n) if transposed else (n, 1)
    out = pl.pallas_call(
        kernel,
        out_shape=jax.ShapeDtypeStruct(out_arr_shape, jnp.float32),
        grid_spec=pltpu.PrefetchScalarGridSpec(
            num_scalar_prefetch=0,
            grid=(n_blocks,),
            in_specs=in_specs,
            out_specs=pl.BlockSpec(blk_v, samp_map1),
        ),
        compiler_params=pltpu.CompilerParams(
            dimension_semantics=("parallel",), **cp),
    )(*args)
    return out.reshape(n)


# ----------------------------------------------------------------------------
# Pure-JAX reference mirroring the PyTorch module.
# ----------------------------------------------------------------------------
def _focal_loss_ref(logits, target, gamma=2, alpha=None, size_average=True):
    logits = logits.astype(jnp.float32)
    lse = jax.nn.logsumexp(logits, axis=-1)
    x_t = jnp.take_along_axis(logits, target[:, None].astype(jnp.int32), axis=-1)[:, 0]
    ce = lse - x_t
    pt = jnp.exp(-ce)
    loss = (1.0 - pt) ** gamma * ce
    if alpha is not None:
        a = jnp.asarray(alpha, dtype=jnp.float32)
        loss = a[target] * loss
    if size_average:
        loss = jnp.mean(loss)
    return loss


if __name__ == "__main__":
    key = jax.random.PRNGKey(0)
    k1, k2, k3, k4 = jax.random.split(key, 4)

    # --- small class count (C < 128): samples-on-lanes kernel ---------------
    N, C = 16, 4
    logits = jax.random.normal(k1, (N, C), dtype=jnp.float32)
    target = jax.random.randint(k2, (N,), 0, C, dtype=jnp.int32)
    alpha = [0.1, 0.2, 0.3, 0.4]

    out = jax.block_until_ready(focal_loss(logits, target, gamma=2, alpha=None, size_average=True))
    ref = _focal_loss_ref(logits, target, 2, None, True)
    assert jnp.allclose(out, ref, atol=1e-5, rtol=1e-5), (out, ref)

    out = jax.block_until_ready(focal_loss(logits, target, gamma=2, alpha=alpha, size_average=True))
    ref = _focal_loss_ref(logits, target, 2, alpha, True)
    assert jnp.allclose(out, ref, atol=1e-5, rtol=1e-5), (out, ref)

    out = jax.block_until_ready(focal_loss(logits, target, gamma=2, alpha=alpha, size_average=False))
    ref = _focal_loss_ref(logits, target, 2, alpha, False)
    assert jnp.allclose(out, ref, atol=1e-5, rtol=1e-5), (out, ref)

    # bf16 logits: DMA stays bf16, upcast happens in-kernel.
    lb = logits.astype(jnp.bfloat16)
    out = jax.block_until_ready(focal_loss(lb, target, gamma=2, alpha=None, size_average=True))
    ref = _focal_loss_ref(lb, target, 2, None, True)
    assert jnp.allclose(out, ref, atol=1e-5, rtol=1e-5), (out, ref)

    # --- wide class count (C >= 128): classes-on-lanes kernel ---------------
    N2, C2 = 64, 256
    logits2 = jax.random.normal(k3, (N2, C2), dtype=jnp.float32)
    target2 = jax.random.randint(k4, (N2,), 0, C2, dtype=jnp.int32)

    out = jax.block_until_ready(focal_loss(logits2, target2, gamma=2, alpha=None, size_average=True))
    ref = _focal_loss_ref(logits2, target2, 2, None, True)
    assert jnp.allclose(out, ref, atol=1e-5, rtol=1e-5), (out, ref)

    out = jax.block_until_ready(focal_loss(logits2, target2, gamma=2, alpha=None, size_average=False))
    ref = _focal_loss_ref(logits2, target2, 2, None, False)
    assert jnp.allclose(out, ref, atol=1e-5, rtol=1e-5), (out, ref)

    print("KERNEL_OK")
</pallas_src>

<mosaic_0001>
module attributes {stable_mosaic.version = 11 : i64} {
  func.func @_focal_mean_kernel(%arg0: i32, %arg1: i32, %arg2: memref<4x16xf32, #tpu.memory_space<vmem>>, %arg3: memref<1x16xi32, #tpu.memory_space<vmem>>, %arg4: memref<8x128xf32, #tpu.memory_space<vmem>>, %arg5: memref<1x16xf32, #tpu.memory_space<vmem>>) attributes {dimension_semantics = [#tpu.dimension_semantics<arbitrary>, #tpu.dimension_semantics<arbitrary>], iteration_bounds = array<i64: 1, 1>, scalar_prefetch = 0 : i64, scratch_operands = 1 : i64, tpu.core_type = #tpu.core_type<tc>, window_params = [{transform_indices = @transform_0, window_bounds = array<i64: 4, 16>}, {transform_indices = @transform_1, window_bounds = array<i64: 1, 16>}, {transform_indices = @transform_2, window_bounds = array<i64: 8, 128>}]} {
    %c0_i32 = arith.constant 0 : i32
    %0 = arith.cmpi eq, %arg1, %c0_i32 : i32
    %1 = arith.extui %0 : i1 to i32
    %c0_i32_0 = arith.constant 0 : i32
    %2 = arith.cmpi ne, %1, %c0_i32_0 : i32
    scf.if %2 {
      %cst_18 = arith.constant 0.000000e+00 : f32
      %47 = vector.broadcast %cst_18 : f32 to vector<1x16xf32>
      %c0_19 = arith.constant 0 : index
      %c0_20 = arith.constant 0 : index
      %48 = vector.load %arg5[%c0_19, %c0_20] : memref<1x16xf32, #tpu.memory_space<vmem>>, vector<1x16xf32>
      tpu.vector_store %arg5[%c0_19, %c0_20], %47 {strides = array<i32>} : memref<1x16xf32, #tpu.memory_space<vmem>>, vector<1x16xf32>,
    } else {
    }
    %c0 = arith.constant 0 : index
    %c0_1 = arith.constant 0 : index
    %3 = vector.load %arg2[%c0, %c0_1] : memref<4x16xf32, #tpu.memory_space<vmem>>, vector<4x16xf32>
    %c0_2 = arith.constant 0 : index
    %c0_3 = arith.constant 0 : index
    %4 = vector.load %arg3[%c0_2, %c0_3] : memref<1x16xi32, #tpu.memory_space<vmem>>, vector<1x16xi32>
    %5 = tpu.iota {dimensions = array<i32: 0>} : vector<4x16xi32>
    %6 = vector.broadcast %4 : vector<1x16xi32> to vector<4x16xi32>
    %7 = arith.cmpi eq, %5, %6 : vector<4x16xi32>
    %cst = arith.constant 0.000000e+00 : f32
    %8 = vector.broadcast %cst : f32 to vector<4x16xf32>
    %9 = arith.select %7, %3, %8 : vector<4x16xi1>, vector<4x16xf32>
    %cst_4 = arith.constant dense<0.000000e+00> : vector<16xf32>
    %10 = vector.multi_reduction <add>, %9, %cst_4 [0] : vector<4x16xf32> to vector<16xf32>
    %11 = vector.shape_cast %10 : vector<16xf32> to vector<1x16xf32>
    %cst_5 = arith.constant dense<0xFF800000> : vector<16xf32>
    %12 = vector.multi_reduction <maximumf>, %3, %cst_5 [0] : vector<4x16xf32> to vector<16xf32>
    %13 = vector.shape_cast %12 : vector<16xf32> to vector<1x16xf32>
    %14 = vector.broadcast %13 : vector<1x16xf32> to vector<4x16xf32>
    %15 = arith.subf %3, %14 : vector<4x16xf32>
    %16 = math.exp %15 : vector<4x16xf32>
    %cst_6 = arith.constant dense<0.000000e+00> : vector<16xf32>
    %17 = vector.multi_reduction <add>, %16, %cst_6 [0] : vector<4x16xf32> to vector<16xf32>
    %18 = vector.shape_cast %17 : vector<16xf32> to vector<1x16xf32>
    %19 = math.log %18 : vector<1x16xf32>
    %20 = arith.subf %13, %11 : vector<1x16xf32>
    %21 = arith.addf %19, %20 : vector<1x16xf32>
    %cst_7 = arith.constant 0.000000e+00 : f32
    %22 = vector.broadcast %cst_7 : f32 to vector<1x16xf32>
    %23 = arith.subf %22, %21 : vector<1x16xf32>
    %24 = math.exp %23 : vector<1x16xf32>
    %cst_8 = arith.constant 1.000000e+00 : f32
    %25 = vector.broadcast %cst_8 : f32 to vector<1x16xf32>
    %26 = arith.subf %25, %24 : vector<1x16xf32>
    %cst_9 = arith.constant 1.000000e+00 : f32
    %27 = vector.broadcast %cst_9 : f32 to vector<1x16xf32>
    %28 = arith.mulf %27, %26 : vector<1x16xf32>
    %29 = arith.mulf %28, %26 : vector<1x16xf32>
    %30 = arith.mulf %29, %21 : vector<1x16xf32>
    %c1_i32 = arith.constant 1 : i32
    %31 = arith.muli %arg0, %c1_i32 : i32
    %32 = arith.addi %31, %arg1 : i32
    %33 = tpu.iota {dimensions = array<i32: 1>} : vector<1x16xi32>
    %c16_i32 = arith.constant 16 : i32
    %34 = arith.muli %32, %c16_i32 : i32
    %35 = vector.broadcast %34 : i32 to vector<1x16xi32>
    %36 = arith.addi %33, %35 : vector<1x16xi32>
    %c16_i32_10 = arith.constant 16 : i32
    %37 = vector.broadcast %c16_i32_10 : i32 to vector<1x16xi32>
    %38 = arith.cmpi slt, %36, %37 : vector<1x16xi32>
    %cst_11 = arith.constant 0.000000e+00 : f32
    %39 = vector.broadcast %cst_11 : f32 to vector<1x16xf32>
    %40 = arith.select %38, %30, %39 : vector<1x16xi1>, vector<1x16xf32>
    %c0_12 = arith.constant 0 : index
    %c0_13 = arith.constant 0 : index
    %41 = vector.load %arg5[%c0_12, %c0_13] : memref<1x16xf32, #tpu.memory_space<vmem>>, vector<1x16xf32>
    %42 = arith.addf %41, %40 : vector<1x16xf32>
    %c0_14 = arith.constant 0 : index
    %c0_15 = arith.constant 0 : index
    %43 = vector.load %arg5[%c0_14, %c0_15] : memref<1x16xf32, #tpu.memory_space<vmem>>, vector<1x16xf32>
    tpu.vector_store %arg5[%c0_14, %c0_15], %42 {strides = array<i32>} : memref<1x16xf32, #tpu.memory_space<vmem>>, vector<1x16xf32>,
    %c0_i32_16 = arith.constant 0 : i32
    %44 = arith.cmpi eq, %arg1, %c0_i32_16 : i32
    %45 = arith.extui %44 : i1 to i32
    %c0_i32_17 = arith.constant 0 : i32
    %46 = arith.cmpi ne, %45, %c0_i32_17 : i32
    scf.if %46 {
      %c0_18 = arith.constant 0 : index
      %c0_19 = arith.constant 0 : index
      %47 = vector.load %arg5[%c0_18, %c0_19] : memref<1x16xf32, #tpu.memory_space<vmem>>, vector<1x16xf32>
      %48 = vector.shape_cast %47 : vector<1x16xf32> to vector<1x1x16xf32>
      %cst_20 = arith.constant dense<0.000000e+00> : vector<1xf32>
      %49 = vector.multi_reduction <add>, %48, %cst_20 [1, 2] : vector<1x1x16xf32> to vector<1xf32>
      %50 = vector.shape_cast %49 : vector<1xf32> to vector<1x1x1xf32>
      %51 = vector.extract %50[0, 0, 0] : f32 from vector<1x1x1xf32>
      %cst_21 = arith.constant 6.250000e-02 : f32
      %52 = arith.mulf %51, %cst_21 : f32
      %53 = vector.broadcast %52 : f32 to vector<8x128xf32>
      %c0_22 = arith.constant 0 : index
      %c0_23 = arith.constant 0 : index
      %54 = vector.load %arg4[%c0_22, %c0_23] : memref<8x128xf32, #tpu.memory_space<vmem>>, vector<8x128xf32>
      tpu.vector_store %arg4[%c0_22, %c0_23], %53 {strides = array<i32>} : memref<8x128xf32, #tpu.memory_space<vmem>>, vector<8x128xf32>,
    } else {
    }
    return
  }
  func.func @transform_0(%arg0: i32, %arg1: i32) -> (i32, i32) {
    %c1_i32 = arith.constant 1 : i32
    %0 = arith.muli %arg0, %c1_i32 : i32
    %1 = arith.addi %0, %arg1 : i32
    %c0_i32 = arith.constant 0 : i32
    %2 = arith.minsi %1, %c0_i32 : i32
    %c0_i32_0 = arith.constant 0 : i32
    %c0_i32_1 = arith.constant 0 : i32
    return %c0_i32_0, %2 : i32, i32
  }
  func.func @transform_1(%arg0: i32, %arg1: i32) -> (i32, i32) {
    %c1_i32 = arith.constant 1 : i32
    %0 = arith.muli %arg0, %c1_i32 : i32
    %1 = arith.addi %0, %arg1 : i32
    %c0_i32 = arith.constant 0 : i32
    %2 = arith.minsi %1, %c0_i32 : i32
    %c0_i32_0 = arith.constant 0 : i32
    %c0_i32_1 = arith.constant 0 : i32
    return %c0_i32_0, %2 : i32, i32
  }
  func.func @transform_2(%arg0: i32, %arg1: i32) -> (i32, i32) {
    %c0_i32 = arith.constant 0 : i32
    %c0_i32_0 = arith.constant 0 : i32
    return %arg0, %c0_i32 : i32, i32
  }
}

</mosaic_0001>

<llo_original>
// kernel: tpu_custom_call.1
$region0: #{tpu_custom_call.1}
  #allocation0 [shape = 'u32[]', space=smem, size = 0x4, offset = 0x4, fixed_abs, tag = 'smem constant byte address 0x4 - core index']
  #allocation1 [shape = 'u32[144,128]{1,0:T(1,128)}', space=vmem, size = 0x12000, scoped, tag = 'internal scratch']
  #allocation2 [shape = 'f32[1,16]{1,0:T(1,128)}', space=vmem, size = 0x200, scoped, tag = 'scratch operand']
  %s0 = inlined_call_operand.hbm [shape: f32[4,16], index: 0, kind: input, shape index: {}]
  %s1 = inlined_call_operand.vmem [shape: s32[1,16], index: 1, kind: input, shape index: {}]
  %s2 = inlined_call_operand.hbm [shape: f32[8,128], index: 2, kind: output, shape index: {}]
  %s3 = sld [smem:[#allocation0]]
  $region30: #{tpu_custom_call.1} parent=0
    _
  %s5 = ssub.s32 1, %s3
  %s6 = scalar_select 0, %s5, %s3
  $region1: #{tpu_custom_call.1} parent=0
    #allocation3 [shape = 'u8[2048]{0}', space=vmem, size = 0x800, scoped, tag = 'input window, operand 0, single buffered']
    #allocation4 [shape = 's32[1]{0}', space=sflag, size = 0x4, scoped, tag = 'scoped memory for tpu_custom_call.1']
    #allocation5 [shape = 's32[1]{0}', space=sflag, size = 0x4, scoped, tag = 'scoped memory for tpu_custom_call.1']
    #allocation6 [shape = 'u8[4096]{0}', space=vmem, size = 0x1000, scoped, tag = 'output window, operand 0, single buffered']
    %7 = vsyncpa [#allocation4], 0
    %8 = vsyncpa [#allocation5], 0
    // Predicated region
    $region2: #{tpu_custom_call.1} parent=1 // pred_check
      _
    $region3: #{tpu_custom_call.1} parent=1 // pred_check_branch
      %10 = sbr.rel (0) target = $region5
    $region4: #{tpu_custom_call.1} parent=1 // pred_region
      %s11 = sadd.s32 0, 0
      %p12 = scmp.lt.s32.totalorder %s11, 0
      %s13 = scalar_select %p12, %s11, 0
      %s15 = ssub.s32 64, 64
      %16 = vsyncadd [#allocation4], %s15
      %s17 = smul.addr %s13, 64
      %s18 = scalar_lea.hbm %s0, %s17
      %s20 = sshll.u32 [#allocation3], 4
      %s21 = int_to_ptr.vmem [resolvable:$true] %s20
      %23 = dma.hbm_to_vmem [thread:$0]  %s18, 64, %s21, [#allocation4]
    $region5: #{tpu_custom_call.1} parent=1 // pred_fallthru
      _
    // Predicated region
    $region6: #{tpu_custom_call.1} parent=1 // pred_check
      _
    $region7: #{tpu_custom_call.1} parent=1 // pred_check_branch
      %25 = sbr.rel (0) target = $region9
    $region8: #{tpu_custom_call.1} parent=1 // pred_region
      %s26 = sadd.s32 0, 0
      %p27 = scmp.lt.s32.totalorder %s26, 0
      %s28 = scalar_select %p27, %s26, 0
      %p29 = scmp.lt.s32.totalorder %s28, 0
      %s30 = scalar_select %p29, %s28, 0
      %s31 = scalar_lea.vmem %s1, %s30
      %s32 = sadd.s32 0, 0
      %p33 = scmp.lt.s32.totalorder %s32, 0
      %s34 = scalar_select %p33, %s32, 0
    $region9: #{tpu_custom_call.1} parent=1 // pred_fallthru
      _
    // Predicated region
    $region10: #{tpu_custom_call.1} parent=1 // pred_check
      _
    $region11: #{tpu_custom_call.1} parent=1 // pred_check_branch
      %36 = sbr.rel (0) target = $region13
    $region12: #{tpu_custom_call.1} parent=1 // pred_region
      %37 = dma.done [#allocation4], 64
    $region13: #{tpu_custom_call.1} parent=1 // pred_fallthru
      _
    %s38 = sadd.s32 0, 0
    %p39 = scmp.lt.s32.totalorder %s38, 0
    %s40 = scalar_select %p39, %s38, 0
    %p41 = scmp.lt.s32.totalorder %s40, 0
    %s42 = scalar_select %p41, %s40, 0
    %s43 = scalar_lea.vmem %s1, %s42
    %s44 = sadd.s32 0, 0
    %p45 = scmp.lt.s32.totalorder %s44, 0
    %s46 = scalar_select %p45, %s44, 0
    %s47 = sadd.s32 0, 0
    %p48 = scmp.lt.s32.totalorder %s47, 0
    %s49 = scalar_select %p48, %s47, 0
    %p50 = scmp.lt.s32.totalorder %s49, 0
    %s51 = scalar_select %p50, %s49, 0
    %s52 = scalar_lea.vmem %s1, %s51
    %s53 = sadd.s32 0, 0
    %p54 = scmp.lt.s32.totalorder %s53, 0
    %s55 = scalar_select %p54, %s53, 0
    %p56 = scmp.eq.s32.totalorder 0, 0
    // Predicated region
    $region14: #{tpu_custom_call.1} parent=1 // pred_check
      %p57 = pneg %p56
    $region15: #{tpu_custom_call.1} parent=1 // pred_check_branch
      %59 = sbr.rel (%p57) target = $region17
    $region16: #{tpu_custom_call.1} parent=1 // pred_region
      %vm60 = vcmask 122880
      %61 = vst.msk [vmem:[#allocation2] sm:$0x1] %vm60, 0.0
    $region17: #{tpu_custom_call.1} parent=1 // pred_fallthru
      _
    %v62 = vld [vmem:[#allocation3] sm:$0xf]
    %v63 = vld [vmem:[%s52] sm:$0x1]
    %v64 = vlaneseq
    %v65 = vshrl.u32 %v64, 7
    %v66 = vlaneseq
    %v67 = vshrl.u32 %v66, 7
    %v68 = vsub.s32 0, %v67
    %v69 = vrot.slane %v63, %v68
    %vm70 = vcmp.eq.s32.totalorder %v65, %v69
    %v71 = vsel %vm70, %v62, 0.0
    %vm72 = vcmask 125952
    %v73 = vsel %vm72, %v71, 0.0
    %v74 = vrot.slane %v73, 4
    %v75 = vadd.f32 %v73, %v74
    %v76 = vrot.slane %v75, 2
    %v77 = vadd.f32 %v75, %v76
    %v78 = vrot.slane %v77, 1
    %v79 = vadd.f32 %v77, %v78
    %v80 = vsel %vm72, %v62, -inf
    %v81 = vrot.slane %v80, 4
    %v82 = vmax.f32 %v80, %v81
    %v83 = vrot.slane %v82, 2
    %v84 = vmax.f32 %v82, %v83
    %v85 = vrot.slane %v84, 1
    %v86 = vmax.f32 %v84, %v85
    %v87 = vsub.f32 %v62, %v86
    %v88 = vmul.f32 %v87, 1.442695
    %v89 = vpow.pop %v88
    %v90 = vsel %vm72, %v89, 0.0
    %v91 = vrot.slane %v90, 4
    %v92 = vadd.f32 %v90, %v91
    %v93 = vrot.slane %v92, 2
    %v94 = vadd.f32 %v92, %v93
    %v95 = vrot.slane %v94, 1
    %v96 = vadd.f32 %v94, %v95
    %v97 = vlog2.pop %v96
    %v98 = vmul.f32 %v97, 0.6931472
    %v99 = vsub.f32 %v86, %v79
    %v100 = vadd.f32 %v98, %v99
    %v101 = vsub.f32 0.0, %v100
    %v102 = vmul.f32 %v101, 1.442695
    %v103 = vpow.pop %v102
    %v104 = vsub.f32 1.0, %v103
    %v105 = vmul.f32 %v104, %v104
    %v106 = vmul.f32 %v105, %v100
    %s107 = sadd.s32 0, 0
    %v108 = vlaneseq
    %v109 = vand.u32 %v108, 127
    %s110 = smul.u32 %s107, 16
    %v111 = vstv %s110
    %v112 = vadd.s32 %v109, %v111
    %vm113 = vcmp.lt.s32.totalorder %v112, 16
    %v114 = vsel %vm113, %v106, 0.0
    %v115 = vld [vmem:[#allocation2] sm:$0x1]
    %v116 = vadd.f32 %v115, %v114
    %vm117 = vcmask 122880
    %118 = vst.msk [vmem:[#allocation2] sm:$0x1] %vm117, %v116
    // Predicated region
    $region18: #{tpu_custom_call.1} parent=1 // pred_check
      %p119 = pneg %p56
    $region19: #{tpu_custom_call.1} parent=1 // pred_check_branch
      %121 = sbr.rel (%p119) target = $region21
    $region20: #{tpu_custom_call.1} parent=1 // pred_region
      %v122 = vld [vmem:[#allocation2] sm:$0x1]
      %v123 = vsel %vm117, %v122, 0.0
      %124 = vadd.xlane.f32.xlu0 %v123
      %v125 = vpop.xlane.xlu0 %124
      %v126 = vrot.slane %v125, 4
      %v127 = vadd.f32 %v125, %v126
      %v128 = vrot.slane %v127, 2
      %v129 = vadd.f32 %v127, %v128
      %v130 = vrot.slane %v129, 1
      %v131 = vadd.f32 %v129, %v130
      %s132 = vtos %v131
      %s133 = smul.f32 %s132, 0.0625
      %v134 = vstv %s133
      %135 = vst [vmem:[#allocation6] sm:$0xff] %v134
    $region21: #{tpu_custom_call.1} parent=1 // pred_fallthru
      _
    // Predicated region
    $region22: #{tpu_custom_call.1} parent=1 // pred_check
      _
    $region23: #{tpu_custom_call.1} parent=1 // pred_check_branch
      %137 = sbr.rel (0) target = $region25
    $region24: #{tpu_custom_call.1} parent=1 // pred_region
      %s139 = ssub.s32 128, 128
      %140 = vsyncadd [#allocation5], %s139
      %s142 = sshll.u32 [#allocation6], 4
      %s143 = int_to_ptr.vmem [resolvable:$true] %s142
      %145 = dma.vmem_to_hbm [thread:$0]  %s143, 128, %s2, [#allocation5]
    $region25: #{tpu_custom_call.1} parent=1 // pred_fallthru
      _
    // Predicated region
    $region26: #{tpu_custom_call.1} parent=1 // pred_check
      _
    $region27: #{tpu_custom_call.1} parent=1 // pred_check_branch
      %147 = sbr.rel (0) target = $region29
    $region28: #{tpu_custom_call.1} parent=1 // pred_region
      %148 = dma.done [#allocation5], 128
    $region29: #{tpu_custom_call.1} parent=1 // pred_fallthru
      _
    %149 = vsyncpa [#allocation4], 1
    %150 = vsyncpa [#allocation5], 1

</llo_original>
